<compile_context>
chip_gen: v7x
topology: tpu7x:2x2x1
jax: 0.10.0
libtpu: 0.0.40
codegen_flags: <defaults>
</compile_context>

<pallas_src>
import functools
import math

import jax
import jax.numpy as jnp
from jax.experimental import pallas as pl
from jax.experimental.pallas import tpu as pltpu


# ----------------------------- parameter setup ------------------------------

def _gaussian_taps(size: int, sigma: float):
    center = size // 2
    c = [math.exp(-((i - center) ** 2) / (2.0 * sigma * sigma)) for i in range(size)]
    s = sum(c)
    return [v / s for v in c]


def _band_matrix(n: int, taps) -> jnp.ndarray:
    """M[r, j] = g[r - j + pad] inside the band, 0 outside (== zero padding)."""
    size = len(taps)
    pad = size // 2
    g = jnp.asarray(taps, dtype=jnp.float32)
    r = jnp.arange(n)[:, None]
    j = jnp.arange(n)[None, :]
    d = r - j + pad
    valid = (d >= 0) & (d < size)
    return jnp.where(valid, g[jnp.clip(d, 0, size - 1)], 0.0).astype(jnp.float32)


def _choose_pack(nc: int, h: int, w: int) -> int:
    """Planes packed per grid step: lane-dense (P*W >= 128) within a VMEM budget."""
    p_target = max(1, -(-128 // w))                    # ceil(128 / W)
    vmem_budget = 12 * 1024 * 1024                     # rough f32 working set per step
    p_cap = max(1, vmem_budget // (20 * h * w * 4))    # ~20 live HxW f32 temporaries
    limit = max(1, min(p_target, p_cap))
    best = 1
    for p in range(1, nc + 1):
        if nc % p == 0 and p <= limit:
            best = p
    return best


# --------------------------------- kernel -----------------------------------

def _ssim_kernel(mm_ref, a_ref, x1_ref, x2_ref, out_ref, pad_ref,
                 *, taps, c1, c2, h, pw):
    # mm_ref  : SMEM (2,)        f32  -> [data_min, 1/(data_max-data_min)]
    # a_ref   : VMEM (PW, PW)    bf16 -> block-diagonal lane-blur band matrix
    # x1_ref  : VMEM (1, H, PW)  f32  -> P prediction planes packed along lanes
    # x2_ref  : VMEM (1, H, PW)  f32  -> P target planes packed along lanes
    # out_ref : VMEM (1, 1, PW)  f32  -> per-group partial sums (lane-dense)
    # pad_ref : VMEM (5, H+2*pad, PW) f32 scratch -> zero-padded stat stack
    nt = len(taps)
    pad = nt // 2

    dmin = mm_ref[0]
    scale = mm_ref[1]
    x1 = (x1_ref[0] - dmin) * scale
    x2 = (x2_ref[0] - dmin) * scale

    # Five pre-blur statistics written into a sublane-zero-padded scratch.
    # The zero pad rows reproduce F.conv2d's zero padding in the H direction
    # and isolate the five statistic images from each other.
    pad_ref[...] = jnp.zeros_like(pad_ref)
    pad_ref[0, pad:pad + h, :] = x1
    pad_ref[1, pad:pad + h, :] = x2
    pad_ref[2, pad:pad + h, :] = x1 * x1
    pad_ref[3, pad:pad + h, :] = x2 * x2
    pad_ref[4, pad:pad + h, :] = x1 * x2

    # H-direction blur: 11-tap shifted accumulation (band structure, f32 VPU).
    acc = taps[0] * pad_ref[:, 0:h, :]
    for k in range(1, nt):
        acc = acc + taps[k] * pad_ref[:, k:k + h, :]

    # W-direction blur: one fused bf16 MXU matmul for all 5 stats x P planes.
    # The block-diagonal band matrix gives per-plane zero padding and prevents
    # cross-plane leakage; accumulation is f32.
    t = jnp.dot(acc.reshape(5 * h, pw).astype(jnp.bfloat16), a_ref[...],
                preferred_element_type=jnp.float32)

    mu1 = t[0 * h:1 * h, :]
    mu2 = t[1 * h:2 * h, :]
    e11 = t[2 * h:3 * h, :]
    e22 = t[3 * h:4 * h, :]
    e12 = t[4 * h:5 * h, :]

    mu1_mu2 = mu1 * mu2
    mu1_sq = mu1 * mu1
    mu2_sq = mu2 * mu2
    num = (2.0 * mu1_mu2 + c1) * (2.0 * (e12 - mu1_mu2) + c2)
    den = (mu1_sq + mu2_sq + c1) * ((e11 - mu1_sq) + (e22 - mu2_sq) + c2)
    ssim_map = num * pl.reciprocal(den, approx=True)

    # Lane-dense per-group partial sum; final reduction happens in JAX.
    out_ref[0] = jnp.sum(ssim_map, axis=0, keepdims=True)


# -------------------------------- wrapper ------------------------------------

def ssim_loss(prediction, target, *, window_size: int = 11, sigma: float = 1.5,
              data_range: float = 1.0):
    """Equivalent of SSIM().forward(prediction, target): returns 1 - mean SSIM."""
    N, C, H, W = prediction.shape
    NC = N * C
    pad = window_size // 2
    taps = _gaussian_taps(window_size, sigma)

    x1 = prediction.astype(jnp.float32).reshape(NC, H, W)
    x2 = target.astype(jnp.float32).reshape(NC, H, W)

    if data_range == 1.0:
        dmax = jnp.maximum(jnp.max(x1), jnp.max(x2))
        dmin = jnp.minimum(jnp.min(x1), jnp.min(x2))
        mm = jnp.stack([dmin, 1.0 / (dmax - dmin)]).astype(jnp.float32)
    else:
        mm = jnp.array([0.0, 1.0], dtype=jnp.float32)

    # Pack P planes along lanes per grid step (layout plumbing done in XLA).
    P = _choose_pack(NC, H, W)
    G = NC // P
    PW = P * W
    x1p = x1.reshape(G, P, H, W).transpose(0, 2, 1, 3).reshape(G, H, PW)
    x2p = x2.reshape(G, P, H, W).transpose(0, 2, 1, 3).reshape(G, H, PW)

    # Block-diagonal lane-blur band matrix (bf16 MXU operand).
    A = _band_matrix(W, taps)
    Ablk = jnp.kron(jnp.eye(P, dtype=jnp.float32), A).astype(jnp.bfloat16)

    c1 = float((0.01 * data_range) ** 2)
    c2 = float((0.03 * data_range) ** 2)

    kernel = functools.partial(_ssim_kernel, taps=tuple(taps), c1=c1, c2=c2,
                               h=H, pw=PW)

    partials = pl.pallas_call(
        kernel,
        out_shape=jax.ShapeDtypeStruct((G, 1, PW), jnp.float32),
        grid=(G,),
        in_specs=[
            pl.BlockSpec(memory_space=pltpu.SMEM),            # mm (2,)
            # constant index map -> fetched once, never re-DMA'd across steps
            # (pl.Buffered(1) would also halve its residency; left at default).
            pl.BlockSpec((PW, PW), lambda i: (0, 0)),          # Ablk (bf16)
            pl.BlockSpec((1, H, PW), lambda i: (i, 0, 0)),     # x1 group
            pl.BlockSpec((1, H, PW), lambda i: (i, 0, 0)),     # x2 group
        ],
        out_specs=pl.BlockSpec((1, 1, PW), lambda i: (i, 0, 0)),
        scratch_shapes=[pltpu.VMEM((5, H + 2 * pad, PW), jnp.float32)],
        compiler_params=pltpu.CompilerParams(
            dimension_semantics=("parallel",),                 # no cross-step state
            vmem_limit_bytes=64 * 1024 * 1024),
    )(mm, Ablk, x1p, x2p)

    ssim_mean = jnp.sum(partials) / jnp.float32(NC * H * W)
    return 1.0 - ssim_mean


# ------------------------- pure-JAX reference (check) ------------------------

def ssim_loss_ref(prediction, target, *, window_size: int = 11,
                  sigma: float = 1.5, data_range: float = 1.0):
    x1 = prediction.astype(jnp.float32)
    x2 = target.astype(jnp.float32)
    if data_range == 1.0:
        dmax = jnp.maximum(x1.max(), x2.max())
        dmin = jnp.minimum(x1.min(), x2.min())
        x1 = (x1 - dmin) / (dmax - dmin)
        x2 = (x2 - dmin) / (dmax - dmin)
    _, _, H, W = prediction.shape
    taps = _gaussian_taps(window_size, sigma)
    Bm = _band_matrix(H, taps)
    Am = _band_matrix(W, taps)

    def blur(z):
        return jnp.einsum('ih,nchw,wj->ncij', Bm, z, Am)

    mu1, mu2 = blur(x1), blur(x2)
    s1 = blur(x1 * x1) - mu1 ** 2
    s2 = blur(x2 * x2) - mu2 ** 2
    s12 = blur(x1 * x2) - mu1 * mu2
    c1 = (0.01 * data_range) ** 2
    c2 = (0.03 * data_range) ** 2
    ssim_map = ((2 * mu1 * mu2 + c1) * (2 * s12 + c2)
                / ((mu1 ** 2 + mu2 ** 2 + c1) * (s1 + s2 + c2)))
    return 1.0 - ssim_map.mean()


# ---------------------------------- main --------------------------------------

if __name__ == "__main__":
    key = jax.random.PRNGKey(0)
    k1, k2 = jax.random.split(key)
    pred = jax.random.uniform(k1, (2, 4, 16, 16), dtype=jnp.float32)
    targ = jax.random.uniform(k2, (2, 4, 16, 16), dtype=jnp.float32)

    out = jax.jit(ssim_loss)(pred, targ)
    out = jax.block_until_ready(out)

    ref = ssim_loss_ref(pred, targ)
    assert bool(jnp.isfinite(out)), out
    # Tolerance covers the bf16 MXU operands + approx reciprocal (review items);
    # real bugs (padding / normalization / weights) show up at the 1e-1 level.
    assert abs(float(out) - float(ref)) < 2e-2, (float(out), float(ref))
    print("KERNEL_OK")
</pallas_src>

<mosaic_0001>
module attributes {stable_mosaic.version = 11 : i64} {
  func.func @_ssim_kernel(%arg0: i32, %arg1: memref<2xf32, #tpu.memory_space<smem>>, %arg2: memref<128x128xbf16, #tpu.memory_space<vmem>>, %arg3: memref<1x16x128xf32, #tpu.memory_space<vmem>>, %arg4: memref<1x16x128xf32, #tpu.memory_space<vmem>>, %arg5: memref<1x1x128xf32, #tpu.memory_space<vmem>>, %arg6: memref<5x26x128xf32, #tpu.memory_space<vmem>>) attributes {dimension_semantics = [#tpu.dimension_semantics<parallel>], iteration_bounds = array<i64: 1>, scalar_prefetch = 0 : i64, scratch_operands = 1 : i64, tpu.core_type = #tpu.core_type<tc>, window_params = [{transform_indices = @transform_0, window_bounds = array<i64: 2>}, {pipeline_mode = #tpu.pipeline_mode<synchronous>, transform_indices = @transform_1, window_bounds = array<i64: 128, 128>}, {transform_indices = @transform_2, window_bounds = array<i64: 1, 16, 128>}, {transform_indices = @transform_3, window_bounds = array<i64: 1, 16, 128>}, {transform_indices = @transform_4, window_bounds = array<i64: 1, 1, 128>}]} {
    %c0 = arith.constant 0 : index
    %0 = memref.load %arg1[%c0] : memref<2xf32, #tpu.memory_space<smem>>
    %c1 = arith.constant 1 : index
    %1 = memref.load %arg1[%c1] : memref<2xf32, #tpu.memory_space<smem>>
    %c0_0 = arith.constant 0 : index
    %c0_1 = arith.constant 0 : index
    %c0_2 = arith.constant 0 : index
    %2 = vector.load %arg3[%c0_0, %c0_1, %c0_2] : memref<1x16x128xf32, #tpu.memory_space<vmem>>, vector<1x16x128xf32>
    %3 = vector.shape_cast %2 : vector<1x16x128xf32> to vector<16x128xf32>
    %4 = vector.broadcast %0 : f32 to vector<16x128xf32>
    %5 = arith.subf %3, %4 : vector<16x128xf32>
    %6 = vector.broadcast %1 : f32 to vector<16x128xf32>
    %7 = arith.mulf %5, %6 : vector<16x128xf32>
    %c0_3 = arith.constant 0 : index
    %c0_4 = arith.constant 0 : index
    %c0_5 = arith.constant 0 : index
    %8 = vector.load %arg4[%c0_3, %c0_4, %c0_5] : memref<1x16x128xf32, #tpu.memory_space<vmem>>, vector<1x16x128xf32>
    %9 = vector.shape_cast %8 : vector<1x16x128xf32> to vector<16x128xf32>
    %10 = vector.broadcast %0 : f32 to vector<16x128xf32>
    %11 = arith.subf %9, %10 : vector<16x128xf32>
    %12 = vector.broadcast %1 : f32 to vector<16x128xf32>
    %13 = arith.mulf %11, %12 : vector<16x128xf32>
    %cst = arith.constant 0.000000e+00 : f32
    %14 = vector.broadcast %cst : f32 to vector<5x26x128xf32>
    %c0_6 = arith.constant 0 : index
    %c0_7 = arith.constant 0 : index
    %c0_8 = arith.constant 0 : index
    %15 = vector.load %arg6[%c0_6, %c0_7, %c0_8] : memref<5x26x128xf32, #tpu.memory_space<vmem>>, vector<5x26x128xf32>
    tpu.vector_store %arg6[%c0_6, %c0_7, %c0_8], %14 {strides = array<i32>} : memref<5x26x128xf32, #tpu.memory_space<vmem>>, vector<5x26x128xf32>,
    %c0_9 = arith.constant 0 : index
    %c5 = arith.constant 5 : index
    %c0_10 = arith.constant 0 : index
    %16 = vector.load %arg6[%c0_9, %c5, %c0_10] : memref<5x26x128xf32, #tpu.memory_space<vmem>>, vector<1x16x128xf32>
    %17 = vector.shape_cast %16 : vector<1x16x128xf32> to vector<16x128xf32>
    %18 = vector.shape_cast %7 : vector<16x128xf32> to vector<1x16x128xf32>
    tpu.vector_store %arg6[%c0_9, %c5, %c0_10], %18 {strides = array<i32>} : memref<5x26x128xf32, #tpu.memory_space<vmem>>, vector<1x16x128xf32>,
    %c1_11 = arith.constant 1 : index
    %c5_12 = arith.constant 5 : index
    %c0_13 = arith.constant 0 : index
    %19 = vector.load %arg6[%c1_11, %c5_12, %c0_13] : memref<5x26x128xf32, #tpu.memory_space<vmem>>, vector<1x16x128xf32>
    %20 = vector.shape_cast %19 : vector<1x16x128xf32> to vector<16x128xf32>
    %21 = vector.shape_cast %13 : vector<16x128xf32> to vector<1x16x128xf32>
    tpu.vector_store %arg6[%c1_11, %c5_12, %c0_13], %21 {strides = array<i32>} : memref<5x26x128xf32, #tpu.memory_space<vmem>>, vector<1x16x128xf32>,
    %22 = arith.mulf %7, %7 : vector<16x128xf32>
    %c2 = arith.constant 2 : index
    %c5_14 = arith.constant 5 : index
    %c0_15 = arith.constant 0 : index
    %23 = vector.load %arg6[%c2, %c5_14, %c0_15] : memref<5x26x128xf32, #tpu.memory_space<vmem>>, vector<1x16x128xf32>
    %24 = vector.shape_cast %23 : vector<1x16x128xf32> to vector<16x128xf32>
    %25 = vector.shape_cast %22 : vector<16x128xf32> to vector<1x16x128xf32>
    tpu.vector_store %arg6[%c2, %c5_14, %c0_15], %25 {strides = array<i32>} : memref<5x26x128xf32, #tpu.memory_space<vmem>>, vector<1x16x128xf32>,
    %26 = arith.mulf %13, %13 : vector<16x128xf32>
    %c3 = arith.constant 3 : index
    %c5_16 = arith.constant 5 : index
    %c0_17 = arith.constant 0 : index
    %27 = vector.load %arg6[%c3, %c5_16, %c0_17] : memref<5x26x128xf32, #tpu.memory_space<vmem>>, vector<1x16x128xf32>
    %28 = vector.shape_cast %27 : vector<1x16x128xf32> to vector<16x128xf32>
    %29 = vector.shape_cast %26 : vector<16x128xf32> to vector<1x16x128xf32>
    tpu.vector_store %arg6[%c3, %c5_16, %c0_17], %29 {strides = array<i32>} : memref<5x26x128xf32, #tpu.memory_space<vmem>>, vector<1x16x128xf32>,
    %30 = arith.mulf %7, %13 : vector<16x128xf32>
    %c4 = arith.constant 4 : index
    %c5_18 = arith.constant 5 : index
    %c0_19 = arith.constant 0 : index
    %31 = vector.load %arg6[%c4, %c5_18, %c0_19] : memref<5x26x128xf32, #tpu.memory_space<vmem>>, vector<1x16x128xf32>
    %32 = vector.shape_cast %31 : vector<1x16x128xf32> to vector<16x128xf32>
    %33 = vector.shape_cast %30 : vector<16x128xf32> to vector<1x16x128xf32>
    tpu.vector_store %arg6[%c4, %c5_18, %c0_19], %33 {strides = array<i32>} : memref<5x26x128xf32, #tpu.memory_space<vmem>>, vector<1x16x128xf32>,
    %c0_20 = arith.constant 0 : index
    %c0_21 = arith.constant 0 : index
    %c0_22 = arith.constant 0 : index
    %34 = vector.load %arg6[%c0_20, %c0_21, %c0_22] : memref<5x26x128xf32, #tpu.memory_space<vmem>>, vector<5x16x128xf32>
    %cst_23 = arith.constant 0.00102838012 : f32
    %35 = vector.broadcast %cst_23 : f32 to vector<5x16x128xf32>
    %36 = arith.mulf %35, %34 : vector<5x16x128xf32>
    %c0_24 = arith.constant 0 : index
    %c1_25 = arith.constant 1 : index
    %c0_26 = arith.constant 0 : index
    %37 = vector.load %arg6[%c0_24, %c1_25, %c0_26] : memref<5x26x128xf32, #tpu.memory_space<vmem>>, vector<5x16x128xf32>
    %cst_27 = arith.constant 0.00759875821 : f32
    %38 = vector.broadcast %cst_27 : f32 to vector<5x16x128xf32>
    %39 = arith.mulf %38, %37 : vector<5x16x128xf32>
    %40 = arith.addf %36, %39 : vector<5x16x128xf32>
    %c0_28 = arith.constant 0 : index
    %c2_29 = arith.constant 2 : index
    %c0_30 = arith.constant 0 : index
    %41 = vector.load %arg6[%c0_28, %c2_29, %c0_30] : memref<5x26x128xf32, #tpu.memory_space<vmem>>, vector<5x16x128xf32>
    %cst_31 = arith.constant 0.0360007733 : f32
    %42 = vector.broadcast %cst_31 : f32 to vector<5x16x128xf32>
    %43 = arith.mulf %42, %41 : vector<5x16x128xf32>
    %44 = arith.addf %40, %43 : vector<5x16x128xf32>
    %c0_32 = arith.constant 0 : index
    %c3_33 = arith.constant 3 : index
    %c0_34 = arith.constant 0 : index
    %45 = vector.load %arg6[%c0_32, %c3_33, %c0_34] : memref<5x26x128xf32, #tpu.memory_space<vmem>>, vector<5x16x128xf32>
    %cst_35 = arith.constant 0.109360687 : f32
    %46 = vector.broadcast %cst_35 : f32 to vector<5x16x128xf32>
    %47 = arith.mulf %46, %45 : vector<5x16x128xf32>
    %48 = arith.addf %44, %47 : vector<5x16x128xf32>
    %c0_36 = arith.constant 0 : index
    %c4_37 = arith.constant 4 : index
    %c0_38 = arith.constant 0 : index
    %49 = vector.load %arg6[%c0_36, %c4_37, %c0_38] : memref<5x26x128xf32, #tpu.memory_space<vmem>>, vector<5x16x128xf32>
    %cst_39 = arith.constant 0.213005543 : f32
    %50 = vector.broadcast %cst_39 : f32 to vector<5x16x128xf32>
    %51 = arith.mulf %50, %49 : vector<5x16x128xf32>
    %52 = arith.addf %48, %51 : vector<5x16x128xf32>
    %c0_40 = arith.constant 0 : index
    %c5_41 = arith.constant 5 : index
    %c0_42 = arith.constant 0 : index
    %53 = vector.load %arg6[%c0_40, %c5_41, %c0_42] : memref<5x26x128xf32, #tpu.memory_space<vmem>>, vector<5x16x128xf32>
    %cst_43 = arith.constant 0.266011715 : f32
    %54 = vector.broadcast %cst_43 : f32 to vector<5x16x128xf32>
    %55 = arith.mulf %54, %53 : vector<5x16x128xf32>
    %56 = arith.addf %52, %55 : vector<5x16x128xf32>
    %c0_44 = arith.constant 0 : index
    %c6 = arith.constant 6 : index
    %c0_45 = arith.constant 0 : index
    %57 = vector.load %arg6[%c0_44, %c6, %c0_45] : memref<5x26x128xf32, #tpu.memory_space<vmem>>, vector<5x16x128xf32>
    %cst_46 = arith.constant 0.213005543 : f32
    %58 = vector.broadcast %cst_46 : f32 to vector<5x16x128xf32>
    %59 = arith.mulf %58, %57 : vector<5x16x128xf32>
    %60 = arith.addf %56, %59 : vector<5x16x128xf32>
    %c0_47 = arith.constant 0 : index
    %c7 = arith.constant 7 : index
    %c0_48 = arith.constant 0 : index
    %61 = vector.load %arg6[%c0_47, %c7, %c0_48] : memref<5x26x128xf32, #tpu.memory_space<vmem>>, vector<5x16x128xf32>
    %cst_49 = arith.constant 0.109360687 : f32
    %62 = vector.broadcast %cst_49 : f32 to vector<5x16x128xf32>
    %63 = arith.mulf %62, %61 : vector<5x16x128xf32>
    %64 = arith.addf %60, %63 : vector<5x16x128xf32>
    %c0_50 = arith.constant 0 : index
    %c8 = arith.constant 8 : index
    %c0_51 = arith.constant 0 : index
    %65 = vector.load %arg6[%c0_50, %c8, %c0_51] : memref<5x26x128xf32, #tpu.memory_space<vmem>>, vector<5x16x128xf32>
    %cst_52 = arith.constant 0.0360007733 : f32
    %66 = vector.broadcast %cst_52 : f32 to vector<5x16x128xf32>
    %67 = arith.mulf %66, %65 : vector<5x16x128xf32>
    %68 = arith.addf %64, %67 : vector<5x16x128xf32>
    %c0_53 = arith.constant 0 : index
    %c9 = arith.constant 9 : index
    %c0_54 = arith.constant 0 : index
    %69 = vector.load %arg6[%c0_53, %c9, %c0_54] : memref<5x26x128xf32, #tpu.memory_space<vmem>>, vector<5x16x128xf32>
    %cst_55 = arith.constant 0.00759875821 : f32
    %70 = vector.broadcast %cst_55 : f32 to vector<5x16x128xf32>
    %71 = arith.mulf %70, %69 : vector<5x16x128xf32>
    %72 = arith.addf %68, %71 : vector<5x16x128xf32>
    %c0_56 = arith.constant 0 : index
    %c10 = arith.constant 10 : index
    %c0_57 = arith.constant 0 : index
    %73 = vector.load %arg6[%c0_56, %c10, %c0_57] : memref<5x26x128xf32, #tpu.memory_space<vmem>>, vector<5x16x128xf32>
    %cst_58 = arith.constant 0.00102838012 : f32
    %74 = vector.broadcast %cst_58 : f32 to vector<5x16x128xf32>
    %75 = arith.mulf %74, %73 : vector<5x16x128xf32>
    %76 = arith.addf %72, %75 : vector<5x16x128xf32>
    %77 = vector.shape_cast %76 : vector<5x16x128xf32> to vector<80x128xf32>
    %78 = arith.truncf %77 : vector<80x128xf32> to vector<80x128xbf16>
    %c0_59 = arith.constant 0 : index
    %c0_60 = arith.constant 0 : index
    %79 = vector.load %arg2[%c0_59, %c0_60] : memref<128x128xbf16, #tpu.memory_space<vmem>>, vector<128x128xbf16>
    %cst_61 = arith.constant dense<0.000000e+00> : vector<80x128xf32>
    %80 = tpu.matmul %78, %79, %cst_61 {dimension_numbers = #tpu.dot_dimension_numbers<[1], [0], [0], [1], [0, 0, 1, 1], [], []>} : vector<80x128xbf16>, vector<128x128xbf16>, vector<80x128xf32> -> vector<80x128xf32>
    %81 = vector.extract_strided_slice %80 {offsets = [0, 0], sizes = [16, 128], strides = [1, 1]} : vector<80x128xf32> to vector<16x128xf32>
    %82 = vector.extract_strided_slice %80 {offsets = [16, 0], sizes = [16, 128], strides = [1, 1]} : vector<80x128xf32> to vector<16x128xf32>
    %83 = vector.extract_strided_slice %80 {offsets = [32, 0], sizes = [16, 128], strides = [1, 1]} : vector<80x128xf32> to vector<16x128xf32>
    %84 = vector.extract_strided_slice %80 {offsets = [48, 0], sizes = [16, 128], strides = [1, 1]} : vector<80x128xf32> to vector<16x128xf32>
    %85 = vector.extract_strided_slice %80 {offsets = [64, 0], sizes = [16, 128], strides = [1, 1]} : vector<80x128xf32> to vector<16x128xf32>
    %86 = arith.mulf %81, %82 : vector<16x128xf32>
    %87 = arith.mulf %81, %81 : vector<16x128xf32>
    %88 = arith.mulf %82, %82 : vector<16x128xf32>
    %cst_62 = arith.constant 2.000000e+00 : f32
    %89 = vector.broadcast %cst_62 : f32 to vector<16x128xf32>
    %90 = arith.mulf %89, %86 : vector<16x128xf32>
    %cst_63 = arith.constant 9.99999974E-5 : f32
    %91 = vector.broadcast %cst_63 : f32 to vector<16x128xf32>
    %92 = arith.addf %90, %91 : vector<16x128xf32>
    %93 = arith.subf %85, %86 : vector<16x128xf32>
    %cst_64 = arith.constant 2.000000e+00 : f32
    %94 = vector.broadcast %cst_64 : f32 to vector<16x128xf32>
    %95 = arith.mulf %94, %93 : vector<16x128xf32>
    %cst_65 = arith.constant 8.99999984E-4 : f32
    %96 = vector.broadcast %cst_65 : f32 to vector<16x128xf32>
    %97 = arith.addf %95, %96 : vector<16x128xf32>
    %98 = arith.mulf %92, %97 : vector<16x128xf32>
    %99 = arith.addf %87, %88 : vector<16x128xf32>
    %cst_66 = arith.constant 9.99999974E-5 : f32
    %100 = vector.broadcast %cst_66 : f32 to vector<16x128xf32>
    %101 = arith.addf %99, %100 : vector<16x128xf32>
    %102 = arith.subf %83, %87 : vector<16x128xf32>
    %103 = arith.subf %84, %88 : vector<16x128xf32>
    %104 = arith.addf %102, %103 : vector<16x128xf32>
    %cst_67 = arith.constant 8.99999984E-4 : f32
    %105 = vector.broadcast %cst_67 : f32 to vector<16x128xf32>
    %106 = arith.addf %104, %105 : vector<16x128xf32>
    %107 = arith.mulf %101, %106 : vector<16x128xf32>
    %108 = tpu.reciprocal %107 {approx = true} : vector<16x128xf32> -> vector<16x128xf32>
    %109 = arith.mulf %98, %108 : vector<16x128xf32>
    %cst_68 = arith.constant dense<0.000000e+00> : vector<128xf32>
    %110 = vector.multi_reduction <add>, %109, %cst_68 [0] : vector<16x128xf32> to vector<128xf32>
    %111 = vector.shape_cast %110 : vector<128xf32> to vector<1x128xf32>
    %c0_69 = arith.constant 0 : index
    %c0_70 = arith.constant 0 : index
    %c0_71 = arith.constant 0 : index
    %112 = vector.load %arg5[%c0_69, %c0_70, %c0_71] : memref<1x1x128xf32, #tpu.memory_space<vmem>>, vector<1x1x128xf32>
    %113 = vector.shape_cast %112 : vector<1x1x128xf32> to vector<1x128xf32>
    %114 = vector.shape_cast %111 : vector<1x128xf32> to vector<1x1x128xf32>
    tpu.vector_store %arg5[%c0_69, %c0_70, %c0_71], %114 {strides = array<i32>} : memref<1x1x128xf32, #tpu.memory_space<vmem>>, vector<1x1x128xf32>,
    return
  }
  func.func @transform_0(%arg0: i32) -> i32 {
    %c0_i32 = arith.constant 0 : i32
    %c0_i32_0 = arith.constant 0 : i32
    return %c0_i32 : i32
  }
  func.func @transform_1(%arg0: i32) -> (i32, i32) {
    %c0_i32 = arith.constant 0 : i32
    %c0_i32_0 = arith.constant 0 : i32
    %c0_i32_1 = arith.constant 0 : i32
    return %c0_i32, %c0_i32_0 : i32, i32
  }
  func.func @transform_2(%arg0: i32) -> (i32, i32, i32) {
    %c0_i32 = arith.constant 0 : i32
    %c0_i32_0 = arith.constant 0 : i32
    %c0_i32_1 = arith.constant 0 : i32
    return %arg0, %c0_i32, %c0_i32_0 : i32, i32, i32
  }
  func.func @transform_3(%arg0: i32) -> (i32, i32, i32) {
    %c0_i32 = arith.constant 0 : i32
    %c0_i32_0 = arith.constant 0 : i32
    %c0_i32_1 = arith.constant 0 : i32
    return %arg0, %c0_i32, %c0_i32_0 : i32, i32, i32
  }
  func.func @transform_4(%arg0: i32) -> (i32, i32, i32) {
    %c0_i32 = arith.constant 0 : i32
    %c0_i32_0 = arith.constant 0 : i32
    %c0_i32_1 = arith.constant 0 : i32
    return %arg0, %c0_i32, %c0_i32_0 : i32, i32, i32
  }
}

</mosaic_0001>

<llo_original>
// kernel: ssim_loss.1
$region0: #{ssim_loss.1}
  #allocation0 [shape = 'u32[]', space=smem, size = 0x4, offset = 0x4, fixed_abs, tag = 'smem constant byte address 0x4 - core index']
  #allocation1 [shape = 'u32[144,128]{1,0:T(1,128)}', space=vmem, size = 0x12000, scoped, tag = 'internal scratch']
  #allocation2 [shape = 'f32[5,26,128]{2,1,0:T(8,128)}', space=vmem, size = 0x14000, scoped, tag = 'scratch operand']
  %s0 = inlined_call_operand.hbm [shape: f32[2], index: 0, kind: input, shape index: {}]
  %s1 = inlined_call_operand.hbm [shape: bf16[128,128], index: 1, kind: input, shape index: {}]
  %s2 = inlined_call_operand.hbm [shape: f32[1,16,128], index: 2, kind: input, shape index: {}]
  %s3 = inlined_call_operand.hbm [shape: f32[1,16,128], index: 3, kind: input, shape index: {}]
  %s4 = inlined_call_operand.hbm [shape: f32[1,1,128], index: 4, kind: output, shape index: {}]
  %s5 = sld [smem:[#allocation0]]
  $region42: #{ssim_loss.1} parent=0
    _
  %s7 = ssub.s32 1, %s5
  %s8 = scalar_select 0, %s7, %s5
  $region1: #{ssim_loss.1} parent=0
    #allocation3 [shape = 'u8[512]{0}', space=smem, size = 0x200, scoped, tag = 'input window, operand 0, single buffered']
    #allocation4 [shape = 's32[1]{0}', space=sflag, size = 0x4, scoped, tag = 'scoped memory for ssim_loss.1']
    #allocation5 [shape = 's32[1]{0}', space=sflag, size = 0x4, scoped, tag = 'scoped memory for ssim_loss.1']
    #allocation6 [shape = 's32[1]{0}', space=sflag, size = 0x4, scoped, tag = 'scoped memory for ssim_loss.1']
    #allocation7 [shape = 'u8[32768]{0}', space=vmem, size = 0x8000, scoped, tag = 'input window, operand 1, single buffered']
    #allocation8 [shape = 'u8[8192]{0}', space=vmem, size = 0x2000, scoped, tag = 'input window, operand 2, single buffered']
    #allocation9 [shape = 's32[1]{0}', space=sflag, size = 0x4, scoped, tag = 'scoped memory for ssim_loss.1']
    #allocation10 [shape = 'u8[8192]{0}', space=vmem, size = 0x2000, scoped, tag = 'input window, operand 3, single buffered']
    #allocation11 [shape = 'u8[512]{0}', space=vmem, size = 0x400, scoped, tag = 'output window, operand 0, single buffered']
    %9 = vsyncpa [#allocation6], 0
    %10 = vsyncpa [#allocation4], 0
    %11 = vsyncpa [#allocation9], 0
    %12 = vsyncpa [#allocation5], 0
    // Predicated region
    $region2: #{ssim_loss.1} parent=1 // pred_check
      _
    $region3: #{ssim_loss.1} parent=1 // pred_check_branch
      %14 = sbr.rel (0) target = $region5
    $region4: #{ssim_loss.1} parent=1 // pred_region
      %s16 = ssub.s32 16, 16
      %17 = vsyncadd [#allocation6], %s16
      %20 = dma.hbm_to_smem %s0, 16, [#allocation3], [#allocation6]
    $region5: #{ssim_loss.1} parent=1 // pred_fallthru
      _
    // Predicated region
    $region6: #{ssim_loss.1} parent=1 // pred_check
      _
    $region7: #{ssim_loss.1} parent=1 // pred_check_branch
      %22 = sbr.rel (0) target = $region9
    $region8: #{ssim_loss.1} parent=1 // pred_region
      %s24 = ssub.s32 1024, 1024
      %25 = vsyncadd [#allocation4], %s24
      %s26 = sshll.u32 [#allocation7], 4
      %s27 = int_to_ptr.vmem [resolvable:$true] %s26
      %32 = dma.hbm_to_vmem [thread:$0]  %s1, 1024, %s27, [#allocation4], 64, 64, 4
    $region9: #{ssim_loss.1} parent=1 // pred_fallthru
      _
    // Predicated region
    $region10: #{ssim_loss.1} parent=1 // pred_check
      _
    $region11: #{ssim_loss.1} parent=1 // pred_check_branch
      %34 = sbr.rel (0) target = $region13
    $region12: #{ssim_loss.1} parent=1 // pred_region
      %s36 = ssub.s32 256, 256
      %37 = vsyncadd [#allocation9], %s36
      %s38 = sshll.u32 [#allocation8], 4
      %s39 = int_to_ptr.vmem [resolvable:$true] %s38
      %44 = dma.hbm_to_vmem [thread:$0]  %s2, 256, %s39, [#allocation9], 128, 128, 8
    $region13: #{ssim_loss.1} parent=1 // pred_fallthru
      _
    // Predicated region
    $region14: #{ssim_loss.1} parent=1 // pred_check
      _
    $region15: #{ssim_loss.1} parent=1 // pred_check_branch
      %46 = sbr.rel (0) target = $region17
    $region16: #{ssim_loss.1} parent=1 // pred_region
      %s48 = ssub.s32 256, 256
      %49 = vsyncadd [#allocation9], %s48
      %s50 = sshll.u32 [#allocation10], 4
      %s51 = int_to_ptr.vmem [resolvable:$true] %s50
      %56 = dma.hbm_to_vmem [thread:$0]  %s3, 256, %s51, [#allocation9], 128, 128, 8
    $region17: #{ssim_loss.1} parent=1 // pred_fallthru
      _
    // Predicated region
    $region18: #{ssim_loss.1} parent=1 // pred_check
      _
    $region19: #{ssim_loss.1} parent=1 // pred_check_branch
      %58 = sbr.rel (0) target = $region21
    $region20: #{ssim_loss.1} parent=1 // pred_region
      %59 = dma.done [#allocation6], 16
    $region21: #{ssim_loss.1} parent=1 // pred_fallthru
      _
    // Predicated region
    $region22: #{ssim_loss.1} parent=1 // pred_check
      _
    $region23: #{ssim_loss.1} parent=1 // pred_check_branch
      %61 = sbr.rel (0) target = $region25
    $region24: #{ssim_loss.1} parent=1 // pred_region
      %62 = dma.done [#allocation4], 1024
    $region25: #{ssim_loss.1} parent=1 // pred_fallthru
      _
    // Predicated region
    $region26: #{ssim_loss.1} parent=1 // pred_check
      _
    $region27: #{ssim_loss.1} parent=1 // pred_check_branch
      %64 = sbr.rel (0) target = $region29
    $region28: #{ssim_loss.1} parent=1 // pred_region
      %65 = dma.done [#allocation9], 256
    $region29: #{ssim_loss.1} parent=1 // pred_fallthru
      _
    // Predicated region
    $region30: #{ssim_loss.1} parent=1 // pred_check
      _
    $region31: #{ssim_loss.1} parent=1 // pred_check_branch
      %67 = sbr.rel (0) target = $region33
    $region32: #{ssim_loss.1} parent=1 // pred_region
      %68 = dma.done [#allocation9], 256
    $region33: #{ssim_loss.1} parent=1 // pred_fallthru
      _
    %69 = sfence
    %s71 = sld [smem:[#allocation3]]
    %s72 = sld [smem:[#allocation3 + $0x1]]
    %v73 = vld [vmem:[#allocation8] sm:$0xff]
    %v74 = vld [vmem:[#allocation8 + $0x8] sm:$0xff]
    %v75 = vstv %s71
    %v76 = vsub.f32 %v73, %v75
    %v77 = vsub.f32 %v74, %v75
    %v78 = vstv %s72
    %v79 = vmul.f32 %v76, %v78
    %v80 = vmul.f32 %v77, %v78
    %v81 = vld [vmem:[#allocation10] sm:$0xff]
    %v82 = vld [vmem:[#allocation10 + $0x8] sm:$0xff]
    %v83 = vsub.f32 %v81, %v75
    %v84 = vsub.f32 %v82, %v75
    %v85 = vmul.f32 %v83, %v78
    %v86 = vmul.f32 %v84, %v78
    %87 = vst [vmem:[#allocation2] sm:$0xff] 0.0
    %88 = vst [vmem:[#allocation2 + $0x8] sm:$0xff] 0.0
    %89 = vst [vmem:[#allocation2 + $0x10] sm:$0xff] 0.0
    %90 = vst [vmem:[#allocation2 + $0x18] sm:$0x3] 0.0
    %91 = vst [vmem:[#allocation2 + $0x20] sm:$0xff] 0.0
    %92 = vst [vmem:[#allocation2 + $0x28] sm:$0xff] 0.0
    %93 = vst [vmem:[#allocation2 + $0x30] sm:$0xff] 0.0
    %94 = vst [vmem:[#allocation2 + $0x38] sm:$0x3] 0.0
    %95 = vst [vmem:[#allocation2 + $0x40] sm:$0xff] 0.0
    %96 = vst [vmem:[#allocation2 + $0x48] sm:$0xff] 0.0
    %97 = vst [vmem:[#allocation2 + $0x50] sm:$0xff] 0.0
    %98 = vst [vmem:[#allocation2 + $0x58] sm:$0x3] 0.0
    %99 = vst [vmem:[#allocation2 + $0x60] sm:$0xff] 0.0
    %100 = vst [vmem:[#allocation2 + $0x68] sm:$0xff] 0.0
    %101 = vst [vmem:[#allocation2 + $0x70] sm:$0xff] 0.0
    %102 = vst [vmem:[#allocation2 + $0x78] sm:$0x3] 0.0
    %103 = vst [vmem:[#allocation2 + $0x80] sm:$0xff] 0.0
    %104 = vst [vmem:[#allocation2 + $0x88] sm:$0xff] 0.0
    %105 = vst [vmem:[#allocation2 + $0x90] sm:$0xff] 0.0
    %106 = vst [vmem:[#allocation2 + $0x98] sm:$0x3] 0.0
    %107 = vst [vmem:[#allocation2 + $0x5] sm:$0xff] %v79
    %108 = vst [vmem:[#allocation2 + $0xd] sm:$0xff] %v80
    %s109 = scalar_lea.vmem [#allocation2], 32
    %110 = vst [vmem:[%s109 + $0x5] sm:$0xff] %v85
    %111 = vst [vmem:[%s109 + $0xd] sm:$0xff] %v86
    %v112 = vmul.f32 %v79, %v79
    %v113 = vmul.f32 %v80, %v80
    %s114 = scalar_lea.vmem [#allocation2], 64
    %115 = vst [vmem:[%s114 + $0x5] sm:$0xff] %v112
    %116 = vst [vmem:[%s114 + $0xd] sm:$0xff] %v113
    %v117 = vmul.f32 %v85, %v85
    %v118 = vmul.f32 %v86, %v86
    %s119 = scalar_lea.vmem [#allocation2], 96
    %120 = vst [vmem:[%s119 + $0x5] sm:$0xff] %v117
    %121 = vst [vmem:[%s119 + $0xd] sm:$0xff] %v118
    %v122 = vmul.f32 %v79, %v85
    %v123 = vmul.f32 %v80, %v86
    %s124 = scalar_lea.vmem [#allocation2], 128
    %125 = vst [vmem:[%s124 + $0x5] sm:$0xff] %v122
    %126 = vst [vmem:[%s124 + $0xd] sm:$0xff] %v123
    %v127 = vld [vmem:[#allocation2] sm:$0xff]
    %v128 = vld [vmem:[#allocation2 + $0x8] sm:$0xff]
    %v129 = vld [vmem:[#allocation2 + $0x20] sm:$0xff]
    %v130 = vld [vmem:[#allocation2 + $0x28] sm:$0xff]
    %v131 = vld [vmem:[#allocation2 + $0x40] sm:$0xff]
    %v132 = vld [vmem:[#allocation2 + $0x48] sm:$0xff]
    %v133 = vld [vmem:[#allocation2 + $0x60] sm:$0xff]
    %v134 = vld [vmem:[#allocation2 + $0x68] sm:$0xff]
    %v135 = vld [vmem:[#allocation2 + $0x80] sm:$0xff]
    %v136 = vld [vmem:[#allocation2 + $0x88] sm:$0xff]
    %v137 = vmul.f32 %v127, 0.0010283801
    %v138 = vmul.f32 %v128, 0.0010283801
    %v139 = vmul.f32 %v129, 0.0010283801
    %v140 = vmul.f32 %v130, 0.0010283801
    %v141 = vmul.f32 %v131, 0.0010283801
    %v142 = vmul.f32 %v132, 0.0010283801
    %v143 = vmul.f32 %v133, 0.0010283801
    %v144 = vmul.f32 %v134, 0.0010283801
    %v145 = vmul.f32 %v135, 0.0010283801
    %v146 = vmul.f32 %v136, 0.0010283801
    %v147 = vld [vmem:[#allocation2 + $0x1] sm:$0xff]
    %v148 = vld [vmem:[#allocation2 + $0x9] sm:$0xff]
    %v149 = vld [vmem:[#allocation2 + $0x21] sm:$0xff]
    %v150 = vld [vmem:[#allocation2 + $0x29] sm:$0xff]
    %v151 = vld [vmem:[#allocation2 + $0x41] sm:$0xff]
    %v152 = vld [vmem:[#allocation2 + $0x49] sm:$0xff]
    %v153 = vld [vmem:[#allocation2 + $0x61] sm:$0xff]
    %v154 = vld [vmem:[#allocation2 + $0x69] sm:$0xff]
    %v155 = vld [vmem:[#allocation2 + $0x81] sm:$0xff]
    %v156 = vld [vmem:[#allocation2 + $0x89] sm:$0xff]
    %v157 = vmul.f32 %v147, 0.007598758
    %v158 = vmul.f32 %v148, 0.007598758
    %v159 = vmul.f32 %v149, 0.007598758
    %v160 = vmul.f32 %v150, 0.007598758
    %v161 = vmul.f32 %v151, 0.007598758
    %v162 = vmul.f32 %v152, 0.007598758
    %v163 = vmul.f32 %v153, 0.007598758
    %v164 = vmul.f32 %v154, 0.007598758
    %v165 = vmul.f32 %v155, 0.007598758
    %v166 = vmul.f32 %v156, 0.007598758
    %v167 = vadd.f32 %v137, %v157
    %v168 = vadd.f32 %v138, %v158
    %v169 = vadd.f32 %v139, %v159
    %v170 = vadd.f32 %v140, %v160
    %v171 = vadd.f32 %v141, %v161
    %v172 = vadd.f32 %v142, %v162
    %v173 = vadd.f32 %v143, %v163
    %v174 = vadd.f32 %v144, %v164
    %v175 = vadd.f32 %v145, %v165
    %v176 = vadd.f32 %v146, %v166
    %v177 = vld [vmem:[#allocation2 + $0x2] sm:$0xff]
    %v178 = vld [vmem:[#allocation2 + $0xa] sm:$0xff]
    %v179 = vld [vmem:[#allocation2 + $0x22] sm:$0xff]
    %v180 = vld [vmem:[#allocation2 + $0x2a] sm:$0xff]
    %v181 = vld [vmem:[#allocation2 + $0x42] sm:$0xff]
    %v182 = vld [vmem:[#allocation2 + $0x4a] sm:$0xff]
    %v183 = vld [vmem:[#allocation2 + $0x62] sm:$0xff]
    %v184 = vld [vmem:[#allocation2 + $0x6a] sm:$0xff]
    %v185 = vld [vmem:[#allocation2 + $0x82] sm:$0xff]
    %v186 = vld [vmem:[#allocation2 + $0x8a] sm:$0xff]
    %v187 = vmul.f32 %v177, 0.036000773
    %v188 = vmul.f32 %v178, 0.036000773
    %v189 = vmul.f32 %v179, 0.036000773
    %v190 = vmul.f32 %v180, 0.036000773
    %v191 = vmul.f32 %v181, 0.036000773
    %v192 = vmul.f32 %v182, 0.036000773
    %v193 = vmul.f32 %v183, 0.036000773
    %v194 = vmul.f32 %v184, 0.036000773
    %v195 = vmul.f32 %v185, 0.036000773
    %v196 = vmul.f32 %v186, 0.036000773
    %v197 = vadd.f32 %v167, %v187
    %v198 = vadd.f32 %v168, %v188
    %v199 = vadd.f32 %v169, %v189
    %v200 = vadd.f32 %v170, %v190
    %v201 = vadd.f32 %v171, %v191
    %v202 = vadd.f32 %v172, %v192
    %v203 = vadd.f32 %v173, %v193
    %v204 = vadd.f32 %v174, %v194
    %v205 = vadd.f32 %v175, %v195
    %v206 = vadd.f32 %v176, %v196
    %v207 = vld [vmem:[#allocation2 + $0x3] sm:$0xff]
    %v208 = vld [vmem:[#allocation2 + $0xb] sm:$0xff]
    %v209 = vld [vmem:[#allocation2 + $0x23] sm:$0xff]
    %v210 = vld [vmem:[#allocation2 + $0x2b] sm:$0xff]
    %v211 = vld [vmem:[#allocation2 + $0x43] sm:$0xff]
    %v212 = vld [vmem:[#allocation2 + $0x4b] sm:$0xff]
    %v213 = vld [vmem:[#allocation2 + $0x63] sm:$0xff]
    %v214 = vld [vmem:[#allocation2 + $0x6b] sm:$0xff]
    %v215 = vld [vmem:[#allocation2 + $0x83] sm:$0xff]
    %v216 = vld [vmem:[#allocation2 + $0x8b] sm:$0xff]
    %v217 = vmul.f32 %v207, 0.10936069
    %v218 = vmul.f32 %v208, 0.10936069
    %v219 = vmul.f32 %v209, 0.10936069
    %v220 = vmul.f32 %v210, 0.10936069
    %v221 = vmul.f32 %v211, 0.10936069
    %v222 = vmul.f32 %v212, 0.10936069
    %v223 = vmul.f32 %v213, 0.10936069
    %v224 = vmul.f32 %v214, 0.10936069
    %v225 = vmul.f32 %v215, 0.10936069
    %v226 = vmul.f32 %v216, 0.10936069
    %v227 = vadd.f32 %v197, %v217
    %v228 = vadd.f32 %v198, %v218
    %v229 = vadd.f32 %v199, %v219
    %v230 = vadd.f32 %v200, %v220
    %v231 = vadd.f32 %v201, %v221
    %v232 = vadd.f32 %v202, %v222
    %v233 = vadd.f32 %v203, %v223
    %v234 = vadd.f32 %v204, %v224
    %v235 = vadd.f32 %v205, %v225
    %v236 = vadd.f32 %v206, %v226
    %v237 = vld [vmem:[#allocation2 + $0x4] sm:$0xff]
    %v238 = vld [vmem:[#allocation2 + $0xc] sm:$0xff]
    %v239 = vld [vmem:[#allocation2 + $0x24] sm:$0xff]
    %v240 = vld [vmem:[#allocation2 + $0x2c] sm:$0xff]
    %v241 = vld [vmem:[#allocation2 + $0x44] sm:$0xff]
    %v242 = vld [vmem:[#allocation2 + $0x4c] sm:$0xff]
    %v243 = vld [vmem:[#allocation2 + $0x64] sm:$0xff]
    %v244 = vld [vmem:[#allocation2 + $0x6c] sm:$0xff]
    %v245 = vld [vmem:[#allocation2 + $0x84] sm:$0xff]
    %v246 = vld [vmem:[#allocation2 + $0x8c] sm:$0xff]
    %v247 = vmul.f32 %v237, 0.21300554
    %v248 = vmul.f32 %v238, 0.21300554
    %v249 = vmul.f32 %v239, 0.21300554
    %v250 = vmul.f32 %v240, 0.21300554
    %v251 = vmul.f32 %v241, 0.21300554
    %v252 = vmul.f32 %v242, 0.21300554
    %v253 = vmul.f32 %v243, 0.21300554
    %v254 = vmul.f32 %v244, 0.21300554
    %v255 = vmul.f32 %v245, 0.21300554
    %v256 = vmul.f32 %v246, 0.21300554
    %v257 = vadd.f32 %v227, %v247
    %v258 = vadd.f32 %v228, %v248
    %v259 = vadd.f32 %v229, %v249
    %v260 = vadd.f32 %v230, %v250
    %v261 = vadd.f32 %v231, %v251
    %v262 = vadd.f32 %v232, %v252
    %v263 = vadd.f32 %v233, %v253
    %v264 = vadd.f32 %v234, %v254
    %v265 = vadd.f32 %v235, %v255
    %v266 = vadd.f32 %v236, %v256
    %v267 = vld [vmem:[#allocation2 + $0x5] sm:$0xff]
    %v268 = vld [vmem:[#allocation2 + $0xd] sm:$0xff]
    %v269 = vld [vmem:[#allocation2 + $0x25] sm:$0xff]
    %v270 = vld [vmem:[#allocation2 + $0x2d] sm:$0xff]
    %v271 = vld [vmem:[#allocation2 + $0x45] sm:$0xff]
    %v272 = vld [vmem:[#allocation2 + $0x4d] sm:$0xff]
    %v273 = vld [vmem:[#allocation2 + $0x65] sm:$0xff]
    %v274 = vld [vmem:[#allocation2 + $0x6d] sm:$0xff]
    %v275 = vld [vmem:[#allocation2 + $0x85] sm:$0xff]
    %v276 = vld [vmem:[#allocation2 + $0x8d] sm:$0xff]
    %v277 = vmul.f32 %v267, 0.26601171
    %v278 = vmul.f32 %v268, 0.26601171
    %v279 = vmul.f32 %v269, 0.26601171
    %v280 = vmul.f32 %v270, 0.26601171
    %v281 = vmul.f32 %v271, 0.26601171
    %v282 = vmul.f32 %v272, 0.26601171
    %v283 = vmul.f32 %v273, 0.26601171
    %v284 = vmul.f32 %v274, 0.26601171
    %v285 = vmul.f32 %v275, 0.26601171
    %v286 = vmul.f32 %v276, 0.26601171
    %v287 = vadd.f32 %v257, %v277
    %v288 = vadd.f32 %v258, %v278
    %v289 = vadd.f32 %v259, %v279
    %v290 = vadd.f32 %v260, %v280
    %v291 = vadd.f32 %v261, %v281
    %v292 = vadd.f32 %v262, %v282
    %v293 = vadd.f32 %v263, %v283
    %v294 = vadd.f32 %v264, %v284
    %v295 = vadd.f32 %v265, %v285
    %v296 = vadd.f32 %v266, %v286
    %v297 = vld [vmem:[#allocation2 + $0x6] sm:$0xff]
    %v298 = vld [vmem:[#allocation2 + $0xe] sm:$0xff]
    %v299 = vld [vmem:[#allocation2 + $0x26] sm:$0xff]
    %v300 = vld [vmem:[#allocation2 + $0x2e] sm:$0xff]
    %v301 = vld [vmem:[#allocation2 + $0x46] sm:$0xff]
    %v302 = vld [vmem:[#allocation2 + $0x4e] sm:$0xff]
    %v303 = vld [vmem:[#allocation2 + $0x66] sm:$0xff]
    %v304 = vld [vmem:[#allocation2 + $0x6e] sm:$0xff]
    %v305 = vld [vmem:[#allocation2 + $0x86] sm:$0xff]
    %v306 = vld [vmem:[#allocation2 + $0x8e] sm:$0xff]
    %v307 = vmul.f32 %v297, 0.21300554
    %v308 = vmul.f32 %v298, 0.21300554
    %v309 = vmul.f32 %v299, 0.21300554
    %v310 = vmul.f32 %v300, 0.21300554
    %v311 = vmul.f32 %v301, 0.21300554
    %v312 = vmul.f32 %v302, 0.21300554
    %v313 = vmul.f32 %v303, 0.21300554
    %v314 = vmul.f32 %v304, 0.21300554
    %v315 = vmul.f32 %v305, 0.21300554
    %v316 = vmul.f32 %v306, 0.21300554
    %v317 = vadd.f32 %v287, %v307
    %v318 = vadd.f32 %v288, %v308
    %v319 = vadd.f32 %v289, %v309
    %v320 = vadd.f32 %v290, %v310
    %v321 = vadd.f32 %v291, %v311
    %v322 = vadd.f32 %v292, %v312
    %v323 = vadd.f32 %v293, %v313
    %v324 = vadd.f32 %v294, %v314
    %v325 = vadd.f32 %v295, %v315
    %v326 = vadd.f32 %v296, %v316
    %v327 = vld [vmem:[#allocation2 + $0x7] sm:$0xff]
    %v328 = vld [vmem:[#allocation2 + $0xf] sm:$0xff]
    %v329 = vld [vmem:[#allocation2 + $0x27] sm:$0xff]
    %v330 = vld [vmem:[#allocation2 + $0x2f] sm:$0xff]
    %v331 = vld [vmem:[#allocation2 + $0x47] sm:$0xff]
    %v332 = vld [vmem:[#allocation2 + $0x4f] sm:$0xff]
    %v333 = vld [vmem:[#allocation2 + $0x67] sm:$0xff]
    %v334 = vld [vmem:[#allocation2 + $0x6f] sm:$0xff]
    %v335 = vld [vmem:[#allocation2 + $0x87] sm:$0xff]
    %v336 = vld [vmem:[#allocation2 + $0x8f] sm:$0xff]
    %v337 = vmul.f32 %v327, 0.10936069
    %v338 = vmul.f32 %v328, 0.10936069
    %v339 = vmul.f32 %v329, 0.10936069
    %v340 = vmul.f32 %v330, 0.10936069
    %v341 = vmul.f32 %v331, 0.10936069
    %v342 = vmul.f32 %v332, 0.10936069
    %v343 = vmul.f32 %v333, 0.10936069
    %v344 = vmul.f32 %v334, 0.10936069
    %v345 = vmul.f32 %v335, 0.10936069
    %v346 = vmul.f32 %v336, 0.10936069
    %v347 = vadd.f32 %v317, %v337
    %v348 = vadd.f32 %v318, %v338
    %v349 = vadd.f32 %v319, %v339
    %v350 = vadd.f32 %v320, %v340
    %v351 = vadd.f32 %v321, %v341
    %v352 = vadd.f32 %v322, %v342
    %v353 = vadd.f32 %v323, %v343
    %v354 = vadd.f32 %v324, %v344
    %v355 = vadd.f32 %v325, %v345
    %v356 = vadd.f32 %v326, %v346
    %v357 = vld [vmem:[#allocation2 + $0x10] sm:$0xff]
    %v358 = vld [vmem:[#allocation2 + $0x30] sm:$0xff]
    %v359 = vld [vmem:[#allocation2 + $0x50] sm:$0xff]
    %v360 = vld [vmem:[#allocation2 + $0x70] sm:$0xff]
    %v361 = vld [vmem:[#allocation2 + $0x90] sm:$0xff]
    %v362 = vmul.f32 %v128, 0.036000773
    %v363 = vmul.f32 %v357, 0.036000773
    %v364 = vmul.f32 %v130, 0.036000773
    %v365 = vmul.f32 %v358, 0.036000773
    %v366 = vmul.f32 %v132, 0.036000773
    %v367 = vmul.f32 %v359, 0.036000773
    %v368 = vmul.f32 %v134, 0.036000773
    %v369 = vmul.f32 %v360, 0.036000773
    %v370 = vmul.f32 %v136, 0.036000773
    %v371 = vmul.f32 %v361, 0.036000773
    %v372 = vadd.f32 %v347, %v362
    %v373 = vadd.f32 %v348, %v363
    %v374 = vadd.f32 %v349, %v364
    %v375 = vadd.f32 %v350, %v365
    %v376 = vadd.f32 %v351, %v366
    %v377 = vadd.f32 %v352, %v367
    %v378 = vadd.f32 %v353, %v368
    %v379 = vadd.f32 %v354, %v369
    %v380 = vadd.f32 %v355, %v370
    %v381 = vadd.f32 %v356, %v371
    %v382 = vld [vmem:[#allocation2 + $0x11] sm:$0xff]
    %v383 = vld [vmem:[#allocation2 + $0x31] sm:$0xff]
    %v384 = vld [vmem:[#allocation2 + $0x51] sm:$0xff]
    %v385 = vld [vmem:[#allocation2 + $0x71] sm:$0xff]
    %v386 = vld [vmem:[#allocation2 + $0x91] sm:$0xff]
    %v387 = vmul.f32 %v382, 0.007598758
    %v388 = vmul.f32 %v383, 0.007598758
    %v389 = vmul.f32 %v384, 0.007598758
    %v390 = vmul.f32 %v385, 0.007598758
    %v391 = vmul.f32 %v386, 0.007598758
    %v392 = vadd.f32 %v372, %v158
    %v393 = vadd.f32 %v373, %v387
    %v394 = vadd.f32 %v374, %v160
    %v395 = vadd.f32 %v375, %v388
    %v396 = vadd.f32 %v376, %v162
    %v397 = vadd.f32 %v377, %v389
    %v398 = vadd.f32 %v378, %v164
    %v399 = vadd.f32 %v379, %v390
    %v400 = vadd.f32 %v380, %v166
    %v401 = vadd.f32 %v381, %v391
    %v402 = vld [vmem:[#allocation2 + $0xa] sm:$0xff]
    %v403 = vld [vmem:[#allocation2 + $0x12] sm:$0xff]
    %v404 = vld [vmem:[#allocation2 + $0x2a] sm:$0xff]
    %v405 = vld [vmem:[#allocation2 + $0x32] sm:$0xff]
    %v406 = vld [vmem:[#allocation2 + $0x4a] sm:$0xff]
    %v407 = vld [vmem:[#allocation2 + $0x52] sm:$0xff]
    %v408 = vld [vmem:[#allocation2 + $0x6a] sm:$0xff]
    %v409 = vld [vmem:[#allocation2 + $0x72] sm:$0xff]
    %v410 = vld [vmem:[#allocation2 + $0x8a] sm:$0xff]
    %v411 = vld [vmem:[#allocation2 + $0x92] sm:$0xff]
    %v412 = vmul.f32 %v402, 0.0010283801
    %v413 = vmul.f32 %v403, 0.0010283801
    %v414 = vmul.f32 %v404, 0.0010283801
    %v415 = vmul.f32 %v405, 0.0010283801
    %v416 = vmul.f32 %v406, 0.0010283801
    %v417 = vmul.f32 %v407, 0.0010283801
    %v418 = vmul.f32 %v408, 0.0010283801
    %v419 = vmul.f32 %v409, 0.0010283801
    %v420 = vmul.f32 %v410, 0.0010283801
    %v421 = vmul.f32 %v411, 0.0010283801
    %v422 = vadd.f32 %v392, %v412
    %v423 = vadd.f32 %v393, %v413
    %v424 = vadd.f32 %v394, %v414
    %v425 = vadd.f32 %v395, %v415
    %v426 = vadd.f32 %v396, %v416
    %v427 = vadd.f32 %v397, %v417
    %v428 = vadd.f32 %v398, %v418
    %v429 = vadd.f32 %v399, %v419
    %v430 = vadd.f32 %v400, %v420
    %v431 = vadd.f32 %v401, %v421
    %v432 = vpack.c.bf16 %v423, %v422
    %v433 = vpack.c.bf16 %v425, %v424
    %v434 = vpack.c.bf16 %v427, %v426
    %v435 = vpack.c.bf16 %v429, %v428
    %v436 = vpack.c.bf16 %v431, %v430
    %v437 = vld [vmem:[#allocation7] sm:$0xf]
    %v438 = vld [vmem:[#allocation7 + $0x4] sm:$0xf]
    %v439 = vld [vmem:[#allocation7 + $0x8] sm:$0xf]
    %v440 = vld [vmem:[#allocation7 + $0xc] sm:$0xf]
    %v441 = vld [vmem:[#allocation7 + $0x10] sm:$0xf]
    %v442 = vld [vmem:[#allocation7 + $0x14] sm:$0xf]
    %v443 = vld [vmem:[#allocation7 + $0x18] sm:$0xf]
    %v444 = vld [vmem:[#allocation7 + $0x1c] sm:$0xf]
    %v445 = vld [vmem:[#allocation7 + $0x20] sm:$0xf]
    %v446 = vld [vmem:[#allocation7 + $0x24] sm:$0xf]
    %v447 = vld [vmem:[#allocation7 + $0x28] sm:$0xf]
    %v448 = vld [vmem:[#allocation7 + $0x2c] sm:$0xf]
    %v449 = vld [vmem:[#allocation7 + $0x30] sm:$0xf]
    %v450 = vld [vmem:[#allocation7 + $0x34] sm:$0xf]
    %v451 = vld [vmem:[#allocation7 + $0x38] sm:$0xf]
    %v452 = vld [vmem:[#allocation7 + $0x3c] sm:$0xf]
    %v469 = vunpack.c.l.b16 %v437
    %v470 = vunpack.c.l.b16 %v438
    %v471 = vunpack.c.l.b16 %v439
    %v472 = vunpack.c.l.b16 %v440
    %v473 = vunpack.c.l.b16 %v441
    %v474 = vunpack.c.l.b16 %v442
    %v475 = vunpack.c.l.b16 %v443
    %v476 = vunpack.c.l.b16 %v444
    %v477 = vunpack.c.l.b16 %v445
    %v478 = vunpack.c.l.b16 %v446
    %v479 = vunpack.c.l.b16 %v447
    %v480 = vunpack.c.l.b16 %v448
    %v481 = vunpack.c.l.b16 %v449
    %v482 = vunpack.c.l.b16 %v450
    %v483 = vunpack.c.l.b16 %v451
    %v484 = vunpack.c.l.b16 %v452
    %v485 = vpack.c.b16 %v470, %v469
    %v486 = vpack.c.b16 %v472, %v471
    %v487 = vpack.c.b16 %v474, %v473
    %v488 = vpack.c.b16 %v476, %v475
    %v489 = vpack.c.b16 %v478, %v477
    %v490 = vpack.c.b16 %v480, %v479
    %v491 = vpack.c.b16 %v482, %v481
    %v492 = vpack.c.b16 %v484, %v483
    %501 = vmatprep.subr.bf16.mxu0 0
    %502 = vmatpush1.bf16.msra.mxu0 %v485
    %503 = vmatprep.subr.bf16.mxu0 0
    %504 = vmatpush1.bf16.msra.mxu0 %v486
    %505 = vmatprep.subr.bf16.mxu0 0
    %506 = vmatpush1.bf16.msra.mxu0 %v487
    %507 = vmatprep.subr.bf16.mxu0 0
    %508 = vmatpush1.bf16.msra.mxu0 %v488
    %509 = vmatprep.subr.bf16.mxu0 0
    %510 = vmatpush1.bf16.msra.mxu0 %v489
    %511 = vmatprep.subr.bf16.mxu0 0
    %512 = vmatpush1.bf16.msra.mxu0 %v490
    %513 = vmatprep.subr.bf16.mxu0 0
    %514 = vmatpush1.bf16.msra.mxu0 %v491
    %515 = vmatprep.subr.bf16.mxu0 0
    %516 = vmatpush1.bf16.msra.mxu0 %v492
    %517 = vmatprep.subr.bf16.mxu0 0
    %518 = vmatpush1.bf16.msra.mxu0 0
    %519 = vmatprep.subr.bf16.mxu0 0
    %520 = vmatpush1.bf16.msra.mxu0 0
    %521 = vmatprep.subr.bf16.mxu0 0
    %522 = vmatpush1.bf16.msra.mxu0 0
    %523 = vmatprep.subr.bf16.mxu0 0
    %524 = vmatpush1.bf16.msra.mxu0 0
    %525 = vmatprep.subr.bf16.mxu0 0
    %526 = vmatpush1.bf16.msra.mxu0 0
    %527 = vmatprep.subr.bf16.mxu0 0
    %528 = vmatpush1.bf16.msra.mxu0 0
    %529 = vmatprep.subr.bf16.mxu0 0
    %530 = vmatpush1.bf16.msra.mxu0 0
    %531 = vmatprep.subr.bf16.mxu0 0
    %532 = vmatpush1.bf16.msra.mxu0 0
    %533 = vmatprep.mubr.bf16.mxu0 0
    %534 = vmatmul.mubr.bf16.gmra.mrb[0].mxu0 %v432
    %v535 = vpop.f32.mrb[0].mxu0
    %v536 = vadd.f32 0.0, %v535
    %v537 = vpop.f32.mrb[0].mxu0
    %v538 = vpop.f32.mrb[0].mxu0
    %v539 = vadd.f32 0.0, %v538
    %v540 = vpop.f32.mrb[0].mxu0
    %541 = vmatprep.mubr.bf16.mxu0 0
    %542 = vmatmul.mubr.bf16.gmra.mrb[0].mxu0 %v433
    %v543 = vpop.f32.mrb[0].mxu0
    %v544 = vadd.f32 0.0, %v543
    %v545 = vpop.f32.mrb[0].mxu0
    %v546 = vpop.f32.mrb[0].mxu0
    %v547 = vadd.f32 0.0, %v546
    %v548 = vpop.f32.mrb[0].mxu0
    %549 = vmatprep.mubr.bf16.mxu0 0
    %550 = vmatmul.mubr.bf16.gmra.mrb[0].mxu0 %v434
    %v551 = vpop.f32.mrb[0].mxu0
    %v552 = vadd.f32 0.0, %v551
    %v553 = vpop.f32.mrb[0].mxu0
    %v554 = vpop.f32.mrb[0].mxu0
    %v555 = vadd.f32 0.0, %v554
    %v556 = vpop.f32.mrb[0].mxu0
    %557 = vmatprep.mubr.bf16.mxu0 0
    %558 = vmatmul.mubr.bf16.gmra.mrb[0].mxu0 %v435
    %v559 = vpop.f32.mrb[0].mxu0
    %v560 = vadd.f32 0.0, %v559
    %v561 = vpop.f32.mrb[0].mxu0
    %v562 = vpop.f32.mrb[0].mxu0
    %v563 = vadd.f32 0.0, %v562
    %v564 = vpop.f32.mrb[0].mxu0
    %565 = vmatprep.mubr.bf16.mxu0 0
    %566 = vmatmul.mubr.bf16.gmra.mrb[0].mxu0 %v436
    %v567 = vpop.f32.mrb[0].mxu0
    %v568 = vadd.f32 0.0, %v567
    %v569 = vpop.f32.mrb[0].mxu0
    %v570 = vpop.f32.mrb[0].mxu0
    %v571 = vadd.f32 0.0, %v570
    %v572 = vpop.f32.mrb[0].mxu0
    %573 = vdwg.mxu0
    %v574 = vmul.f32 %v536, %v544
    %v575 = vmul.f32 %v539, %v547
    %v576 = vmul.f32 %v536, %v536
    %v577 = vmul.f32 %v539, %v539
    %v578 = vmul.f32 %v544, %v544
    %v579 = vmul.f32 %v547, %v547
    %v580 = vmul.f32 %v574, 2.0
    %v581 = vmul.f32 %v575, 2.0
    %v582 = vadd.f32 %v580, 0.0001
    %v583 = vadd.f32 %v581, 0.0001
    %v584 = vsub.f32 %v568, %v574
    %v585 = vsub.f32 %v571, %v575
    %v586 = vmul.f32 %v584, 2.0
    %v587 = vmul.f32 %v585, 2.0
    %v588 = vadd.f32 %v586, 0.0009
    %v589 = vadd.f32 %v587, 0.0009
    %v590 = vmul.f32 %v582, %v588
    %v591 = vmul.f32 %v583, %v589
    %v592 = vadd.f32 %v576, %v578
    %v593 = vadd.f32 %v577, %v579
    %v594 = vadd.f32 %v592, 0.0001
    %v595 = vadd.f32 %v593, 0.0001
    %v596 = vsub.f32 %v552, %v576
    %v597 = vsub.f32 %v555, %v577
    %v598 = vsub.f32 %v560, %v578
    %v599 = vsub.f32 %v563, %v579
    %v600 = vadd.f32 %v596, %v598
    %v601 = vadd.f32 %v597, %v599
    %v602 = vadd.f32 %v600, 0.0009
    %v603 = vadd.f32 %v601, 0.0009
    %v604 = vmul.f32 %v594, %v602
    %v605 = vmul.f32 %v595, %v603
    %v606 = vrcp.pop %v604
    %v607 = vrcp.pop %v605
    %v608 = vmul.f32 %v590, %v606
    %v609 = vmul.f32 %v591, %v607
    %v610 = vadd.f32 %v608, %v609
    %v611 = vrot.slane %v610, 4
    %v612 = vadd.f32 %v610, %v611
    %v613 = vrot.slane %v612, 2
    %v614 = vadd.f32 %v612, %v613
    %v615 = vrot.slane %v614, 1
    %v616 = vadd.f32 %v614, %v615
    %617 = vst [vmem:[#allocation11] sm:$0x1] %v616
    // Predicated region
    $region34: #{ssim_loss.1} parent=1 // pred_check
      _
    $region35: #{ssim_loss.1} parent=1 // pred_check_branch
      %619 = sbr.rel (0) target = $region37
    $region36: #{ssim_loss.1} parent=1 // pred_region
      %s621 = ssub.s32 16, 16
      %622 = vsyncadd [#allocation5], %s621
      %s624 = sshll.u32 [#allocation11], 4
      %s625 = int_to_ptr.vmem [resolvable:$true] %s624
      %627 = dma.vmem_to_hbm [thread:$0]  %s625, 16, %s4, [#allocation5]
    $region37: #{ssim_loss.1} parent=1 // pred_fallthru
      _
    // Predicated region
    $region38: #{ssim_loss.1} parent=1 // pred_check
      _
    $region39: #{ssim_loss.1} parent=1 // pred_check_branch
      %629 = sbr.rel (0) target = $region41
    $region40: #{ssim_loss.1} parent=1 // pred_region
      %630 = dma.done [#allocation5], 16
    $region41: #{ssim_loss.1} parent=1 // pred_fallthru
      _
    %631 = vsyncpa [#allocation4], 1
    %632 = vsyncpa [#allocation9], 1
    %633 = vsyncpa [#allocation5], 1
    %634 = vsyncpa [#allocation6], 1

</llo_original>
